<compile_context>
chip_gen: v6e
topology: v6e:2x2x1
jax: 0.10.0
libtpu: 0.0.40
codegen_flags: <defaults>
</compile_context>

<pallas_src>
import functools

import jax
import jax.numpy as jnp
from jax import lax
from jax.experimental import pallas as pl
from jax.experimental.pallas import tpu as pltpu


def _agg_head_kernel(x_ref, wq_ref, wk_ref, bq_ref, bk_ref, o_ref, *, scale):
    # Blocks: x_ref (1, N, C); wq/wk (C, C) in right-multiply form; bq/bk (1, C);
    #         o_ref (1, 1, C).
    x = x_ref[0]                       # (N, C), kept in native dtype
    n = x.shape[0]

    # ---- k_sum = sum_n (x @ wk + bk) = (sum_n x) @ wk + N * bk --------------
    # Column sum of x via a (1,N)@(N,C) MXU matvec -> f32 accumulation without
    # upcasting the whole slab.
    ones_row = jnp.ones((1, n), dtype=x.dtype)
    x_sum = jnp.dot(ones_row, x, preferred_element_type=jnp.float32)          # (1, C)
    k_sum = jnp.dot(x_sum, wk_ref[...], preferred_element_type=jnp.float32)
    k_sum = (k_sum + n * bk_ref[...]) * scale                                 # (1, C)

    # ---- weight[n] = q[n] . k_sum = x[n] . (wq @ k_sum^T) + bq . k_sum ------
    # v = k_sum contracted against the output-channel axis of wq -> (1, C_in).
    v = lax.dot_general(k_sum, wq_ref[...], (((1,), (1,)), ((), ())),
                        preferred_element_type=jnp.float32)                   # (1, C)
    w_bias = jnp.sum(bq_ref[...] * k_sum, axis=-1, keepdims=True)             # (1, 1)

    # Lane-major scores: contract C axis of v against C axis of x -> (1, N).
    w_row = lax.dot_general(v.astype(x.dtype), x, (((1,), (1,)), ((), ())),
                            preferred_element_type=jnp.float32)               # (1, N)
    w_row = w_row + w_bias

    # ---- softmax over N (lane axis), f32; exact divide to keep precision ----
    w_row = w_row - jnp.max(w_row, axis=-1, keepdims=True)
    e = jnp.exp(w_row)
    p = e / jnp.sum(e, axis=-1, keepdims=True)                                # (1, N)

    # ---- aggregate: (1, N) @ (N, C) -> (1, C) -------------------------------
    out = jnp.dot(p.astype(x.dtype), x, preferred_element_type=jnp.float32)
    o_ref[0] = out.astype(o_ref.dtype)


def self_attention_aggregation_head(x, wq, wk, bq, bk, *, scale):
    """x: (B, N, C); wq/wk: (C, C) right-multiply form; bq/bk: (1, C)."""
    B, N, C = x.shape
    out = pl.pallas_call(
        functools.partial(_agg_head_kernel, scale=scale),
        out_shape=jax.ShapeDtypeStruct((B, 1, C), x.dtype),
        grid_spec=pltpu.PrefetchScalarGridSpec(
            num_scalar_prefetch=0,
            grid=(B,),
            in_specs=[
                pl.BlockSpec((1, N, C), lambda b: (b, 0, 0)),
                pl.BlockSpec((C, C), lambda b: (0, 0)),
                pl.BlockSpec((C, C), lambda b: (0, 0)),
                pl.BlockSpec((1, C), lambda b: (0, 0)),
                pl.BlockSpec((1, C), lambda b: (0, 0)),
            ],
            out_specs=pl.BlockSpec((1, 1, C), lambda b: (b, 0, 0)),
        ),
        compiler_params=pltpu.CompilerParams(dimension_semantics=("parallel",)),
    )(x, wq, wk, bq, bk)
    # mirrors torch's .squeeze(): (B, 1, C) -> (B, C)  (or (C,) when B == 1)
    return jnp.squeeze(out)


def _reference(x, wq, wk, bq, bk, scale):
    # Direct (un-rewritten) formulation, mirroring the PyTorch module.
    xf = x.astype(jnp.float32)
    q = (xf @ wq + bq) * scale
    k = xf @ wk + bk
    attn = jnp.einsum("bnc,bmc->bnm", q, k)
    weight = jnp.sum(attn, axis=-1)
    p = jax.nn.softmax(weight, axis=-1)
    return jnp.einsum("bn,bnc->bc", p, xf).astype(x.dtype)


if __name__ == "__main__":
    B, N, C = 2, 8, 32
    dim = C
    scale = dim ** (-0.5)

    key = jax.random.PRNGKey(0)
    kx, kw, kb, kproj = jax.random.split(key, 4)

    x = jax.random.normal(kx, (B, N, C), dtype=jnp.float32)

    # qk Linear params: torch weight is (2C, C), y = x @ W.T + b.
    w_qk = 0.02 * jax.random.normal(kw, (2 * C, C), dtype=jnp.float32)
    b_qk = 0.02 * jax.random.normal(kb, (2 * C,), dtype=jnp.float32)
    wq = w_qk[:C].T          # (C, C) right-multiply form
    wk = w_qk[C:].T          # (C, C)
    bq = b_qk[:C].reshape(1, C)
    bk = b_qk[C:].reshape(1, C)

    # proj params (defined in __init__ but unused in forward) — kept for parity.
    w_proj = 0.02 * jax.random.normal(kproj, (C, C), dtype=jnp.float32)

    out = self_attention_aggregation_head(x, wq, wk, bq, bk, scale=scale)
    out = jax.block_until_ready(out)

    ref = _reference(x, wq, wk, bq, bk, scale)
    assert out.shape == (B, C), out.shape
    assert jnp.allclose(out, ref, atol=1e-5, rtol=1e-5)

    print("KERNEL_OK")
</pallas_src>

<mosaic_0001>
module attributes {stable_mosaic.version = 11 : i64} {
  func.func @_agg_head_kernel(%arg0: i32, %arg1: memref<1x8x32xf32, #tpu.memory_space<vmem>>, %arg2: memref<32x32xf32, #tpu.memory_space<vmem>>, %arg3: memref<32x32xf32, #tpu.memory_space<vmem>>, %arg4: memref<1x32xf32, #tpu.memory_space<vmem>>, %arg5: memref<1x32xf32, #tpu.memory_space<vmem>>, %arg6: memref<1x1x32xf32, #tpu.memory_space<vmem>>) attributes {dimension_semantics = [#tpu.dimension_semantics<parallel>], iteration_bounds = array<i64: 2>, scalar_prefetch = 0 : i64, scratch_operands = 0 : i64, tpu.core_type = #tpu.core_type<tc>, window_params = [{transform_indices = @transform_0, window_bounds = array<i64: 1, 8, 32>}, {pipeline_mode = #tpu.pipeline_mode<synchronous>, transform_indices = @transform_1, window_bounds = array<i64: 32, 32>}, {pipeline_mode = #tpu.pipeline_mode<synchronous>, transform_indices = @transform_2, window_bounds = array<i64: 32, 32>}, {pipeline_mode = #tpu.pipeline_mode<synchronous>, transform_indices = @transform_3, window_bounds = array<i64: 1, 32>}, {pipeline_mode = #tpu.pipeline_mode<synchronous>, transform_indices = @transform_4, window_bounds = array<i64: 1, 32>}, {transform_indices = @transform_5, window_bounds = array<i64: 1, 1, 32>}]} {
    %c0 = arith.constant 0 : index
    %c0_0 = arith.constant 0 : index
    %c0_1 = arith.constant 0 : index
    %0 = vector.load %arg1[%c0, %c0_0, %c0_1] : memref<1x8x32xf32, #tpu.memory_space<vmem>>, vector<1x8x32xf32>
    %1 = vector.shape_cast %0 : vector<1x8x32xf32> to vector<8x32xf32>
    %cst = arith.constant 1.000000e+00 : f32
    %2 = vector.broadcast %cst : f32 to vector<1x8xf32>
    %cst_2 = arith.constant dense<0.000000e+00> : vector<1x32xf32>
    %3 = tpu.matmul %2, %1, %cst_2 {dimension_numbers = #tpu.dot_dimension_numbers<[1], [0], [0], [1], [0, 0, 1, 1], [], []>} : vector<1x8xf32>, vector<8x32xf32>, vector<1x32xf32> -> vector<1x32xf32>
    %c0_3 = arith.constant 0 : index
    %c0_4 = arith.constant 0 : index
    %4 = vector.load %arg3[%c0_3, %c0_4] : memref<32x32xf32, #tpu.memory_space<vmem>>, vector<32x32xf32>
    %cst_5 = arith.constant dense<0.000000e+00> : vector<1x32xf32>
    %5 = tpu.matmul %3, %4, %cst_5 {dimension_numbers = #tpu.dot_dimension_numbers<[1], [0], [0], [1], [0, 0, 1, 1], [], []>} : vector<1x32xf32>, vector<32x32xf32>, vector<1x32xf32> -> vector<1x32xf32>
    %c0_6 = arith.constant 0 : index
    %c0_7 = arith.constant 0 : index
    %6 = vector.load %arg5[%c0_6, %c0_7] : memref<1x32xf32, #tpu.memory_space<vmem>>, vector<1x32xf32>
    %cst_8 = arith.constant 8.000000e+00 : f32
    %7 = vector.broadcast %cst_8 : f32 to vector<1x32xf32>
    %8 = arith.mulf %7, %6 : vector<1x32xf32>
    %9 = arith.addf %5, %8 : vector<1x32xf32>
    %cst_9 = arith.constant 0.176776692 : f32
    %10 = vector.broadcast %cst_9 : f32 to vector<1x32xf32>
    %11 = arith.mulf %9, %10 : vector<1x32xf32>
    %c0_10 = arith.constant 0 : index
    %c0_11 = arith.constant 0 : index
    %12 = vector.load %arg2[%c0_10, %c0_11] : memref<32x32xf32, #tpu.memory_space<vmem>>, vector<32x32xf32>
    %cst_12 = arith.constant dense<0.000000e+00> : vector<1x32xf32>
    %13 = tpu.matmul %11, %12, %cst_12 {dimension_numbers = #tpu.dot_dimension_numbers<[1], [1], [0], [0], [0, 0, 1, 0], [], []>} : vector<1x32xf32>, vector<32x32xf32>, vector<1x32xf32> -> vector<1x32xf32>
    %c0_13 = arith.constant 0 : index
    %c0_14 = arith.constant 0 : index
    %14 = vector.load %arg4[%c0_13, %c0_14] : memref<1x32xf32, #tpu.memory_space<vmem>>, vector<1x32xf32>
    %15 = arith.mulf %14, %11 : vector<1x32xf32>
    %cst_15 = arith.constant dense<0.000000e+00> : vector<1xf32>
    %16 = vector.multi_reduction <add>, %15, %cst_15 [1] : vector<1x32xf32> to vector<1xf32>
    %17 = vector.shape_cast %16 : vector<1xf32> to vector<1x1xf32>
    %cst_16 = arith.constant dense<0.000000e+00> : vector<1x8xf32>
    %18 = tpu.matmul %13, %1, %cst_16 {dimension_numbers = #tpu.dot_dimension_numbers<[1], [1], [0], [0], [0, 0, 1, 0], [], []>} : vector<1x32xf32>, vector<8x32xf32>, vector<1x8xf32> -> vector<1x8xf32>
    %19 = vector.broadcast %17 : vector<1x1xf32> to vector<1x8xf32>
    %20 = arith.addf %18, %19 : vector<1x8xf32>
    %cst_17 = arith.constant dense<0xFF800000> : vector<1xf32>
    %21 = vector.multi_reduction <maximumf>, %20, %cst_17 [1] : vector<1x8xf32> to vector<1xf32>
    %22 = vector.shape_cast %21 : vector<1xf32> to vector<1x1xf32>
    %23 = vector.broadcast %22 : vector<1x1xf32> to vector<1x8xf32>
    %24 = arith.subf %20, %23 : vector<1x8xf32>
    %25 = math.exp %24 : vector<1x8xf32>
    %cst_18 = arith.constant dense<0.000000e+00> : vector<1xf32>
    %26 = vector.multi_reduction <add>, %25, %cst_18 [1] : vector<1x8xf32> to vector<1xf32>
    %27 = vector.shape_cast %26 : vector<1xf32> to vector<1x1xf32>
    %28 = vector.broadcast %27 : vector<1x1xf32> to vector<1x8xf32>
    %29 = arith.divf %25, %28 : vector<1x8xf32>
    %cst_19 = arith.constant dense<0.000000e+00> : vector<1x32xf32>
    %30 = tpu.matmul %29, %1, %cst_19 {dimension_numbers = #tpu.dot_dimension_numbers<[1], [0], [0], [1], [0, 0, 1, 1], [], []>} : vector<1x8xf32>, vector<8x32xf32>, vector<1x32xf32> -> vector<1x32xf32>
    %c0_20 = arith.constant 0 : index
    %c0_21 = arith.constant 0 : index
    %c0_22 = arith.constant 0 : index
    %31 = vector.load %arg6[%c0_20, %c0_21, %c0_22] : memref<1x1x32xf32, #tpu.memory_space<vmem>>, vector<1x1x32xf32>
    %32 = vector.shape_cast %31 : vector<1x1x32xf32> to vector<1x32xf32>
    %33 = vector.shape_cast %30 : vector<1x32xf32> to vector<1x1x32xf32>
    tpu.vector_store %arg6[%c0_20, %c0_21, %c0_22], %33 {strides = array<i32>} : memref<1x1x32xf32, #tpu.memory_space<vmem>>, vector<1x1x32xf32>,
    return
  }
  func.func @transform_0(%arg0: i32) -> (i32, i32, i32) {
    %c0_i32 = arith.constant 0 : i32
    %c0_i32_0 = arith.constant 0 : i32
    %c0_i32_1 = arith.constant 0 : i32
    return %arg0, %c0_i32, %c0_i32_0 : i32, i32, i32
  }
  func.func @transform_1(%arg0: i32) -> (i32, i32) {
    %c0_i32 = arith.constant 0 : i32
    %c0_i32_0 = arith.constant 0 : i32
    %c0_i32_1 = arith.constant 0 : i32
    return %c0_i32, %c0_i32_0 : i32, i32
  }
  func.func @transform_2(%arg0: i32) -> (i32, i32) {
    %c0_i32 = arith.constant 0 : i32
    %c0_i32_0 = arith.constant 0 : i32
    %c0_i32_1 = arith.constant 0 : i32
    return %c0_i32, %c0_i32_0 : i32, i32
  }
  func.func @transform_3(%arg0: i32) -> (i32, i32) {
    %c0_i32 = arith.constant 0 : i32
    %c0_i32_0 = arith.constant 0 : i32
    %c0_i32_1 = arith.constant 0 : i32
    return %c0_i32, %c0_i32_0 : i32, i32
  }
  func.func @transform_4(%arg0: i32) -> (i32, i32) {
    %c0_i32 = arith.constant 0 : i32
    %c0_i32_0 = arith.constant 0 : i32
    %c0_i32_1 = arith.constant 0 : i32
    return %c0_i32, %c0_i32_0 : i32, i32
  }
  func.func @transform_5(%arg0: i32) -> (i32, i32, i32) {
    %c0_i32 = arith.constant 0 : i32
    %c0_i32_0 = arith.constant 0 : i32
    %c0_i32_1 = arith.constant 0 : i32
    return %arg0, %c0_i32, %c0_i32_0 : i32, i32, i32
  }
}

</mosaic_0001>

<llo_original>
// kernel: tpu_custom_call.1
$region0: #{tpu_custom_call.1}
  #allocation0 [shape = 'u32[]', space=smem, size = 0x4, offset = 0x4, fixed_abs, tag = 'smem constant byte address 0x4 - core index']
  #allocation1 [shape = 'u32[144,128]{1,0:T(1,128)}', space=vmem, size = 0x12000, scoped, tag = 'internal scratch']
  %s0 = inlined_call_operand.hbm [shape: f32[2,8,32], index: 0, kind: input, shape index: {}]
  %s1 = inlined_call_operand.hbm [shape: f32[32,32], index: 1, kind: input, shape index: {}]
  %s2 = inlined_call_operand.hbm [shape: f32[32,32], index: 2, kind: input, shape index: {}]
  %s3 = inlined_call_operand.vmem [shape: f32[1,32], index: 3, kind: input, shape index: {}]
  %s4 = inlined_call_operand.vmem [shape: f32[1,32], index: 4, kind: input, shape index: {}]
  %s5 = inlined_call_operand.hbm [shape: f32[2,1,32], index: 5, kind: output, shape index: {}]
  %s6 = sld [smem:[#allocation0]]
  $region65: #{tpu_custom_call.1} parent=0
    _
  %s8 = ssub.s32 1, %s6
  %s9 = scalar_select 0, %s8, %s6
  $region1: #{tpu_custom_call.1} parent=0
    #allocation2 [shape = 'u8[8192]{0}', space=vmem, size = 0x2000, scoped, tag = 'input window, operand 0']
    #allocation3 [shape = 's32[2]{0}', space=sflag, size = 0x8, scoped, tag = 'scoped memory for tpu_custom_call.1']
    #allocation4 [shape = 's32[2]{0}', space=sflag, size = 0x8, scoped, tag = 'scoped memory for tpu_custom_call.1']
    #allocation5 [shape = 'u8[16384]{0}', space=vmem, size = 0x4000, scoped, tag = 'input window, operand 1, single buffered']
    #allocation6 [shape = 's32[1]{0}', space=sflag, size = 0x4, scoped, tag = 'scoped memory for tpu_custom_call.1']
    #allocation7 [shape = 'u8[16384]{0}', space=vmem, size = 0x4000, scoped, tag = 'input window, operand 2, single buffered']
    #allocation8 [shape = 'u8[1024]{0}', space=vmem, size = 0x400, scoped, tag = 'output window, operand 0']
    %10 = vsyncpa [#allocation3], 0
    %s11 = scalar_lea.sflag [#allocation3], 1
    %12 = vsyncpa %s11, 0
    %13 = vsyncpa [#allocation6], 0
    %14 = vsyncpa [#allocation4], 0
    %s15 = scalar_lea.sflag [#allocation4], 1
    %16 = vsyncpa %s15, 0
    loop: start=0, step=1, limit=4
    $region2: #{tpu_custom_call.1} parent=1 // loop_pre_header
      _
    $region3: #{tpu_custom_call.1} parent=1 // loop_header
      %s18 = sphi 0, %s22
      %p19 = scmp.ge.s32.totalorder %s18, 4
      %s28 = sphi 0, %s30
      %s31 = sphi 0, %s28
      %s32 = sphi 0, %s31
      %s48 = sphi 0, %s32
      %s52 = sphi 0, %s52
      %s54 = sphi 0, %s52
      %s55 = sphi 0, %s54
      %s69 = sphi 0, %s55
      %s73 = sphi 0, %s73
      %s75 = sphi 0, %s73
      %s76 = sphi 0, %s75
      %s90 = sphi 0, %s76
      %s94 = sphi 0, %s94
      %s96 = sphi 0, %s94
      %s97 = sphi 0, %s96
      %s111 = sphi 0, %s97
      %s115 = sphi 0, %s115
      %s117 = sphi 0, %s115
      %s118 = sphi 0, %s117
      %s132 = sphi 0, %s118
      %s138 = sphi 0, %s140
      %s141 = sphi 0, %s138
      %s142 = sphi 0, %s141
      %s158 = sphi 0, %s142
    $region4: #{tpu_custom_call.1} parent=1 // loop_header_branch
      %21 = sbr.rel (%p19) target = $region8
    $region5: #{tpu_custom_call.1} parent=1 // loop_body
      %s23 = ssub.s32 %s18, 1
      %s24 = ssub.s32 %s18, 2
      %s25 = sadd.s32 %s18, 1
      %s26 = ssub.s32 %s18, %s25
      %p27 = scmp.eq.s32.totalorder %s26, 0
      %s29 = sadd.s32 %s28, 1
      %s30 = scalar_select %p27, %s28, %s29
      %p33 = pneg %p27
      %p34 = scmp.eq.s32.totalorder %s18, 1
      %p35 = por %p33, %p34
      %p36 = scmp.ne.s32.totalorder %s28, %s31
      %p37 = scmp.eq.s32.totalorder %s18, 0
      %p38 = por %p36, %p37
      %p39 = scmp.ne.s32.totalorder %s28, %s31
      %p40 = scmp.eq.s32.totalorder %s23, 1
      %p41 = por %p39, %p40
      %p42 = scmp.ne.s32.totalorder %s31, %s32
      %p43 = scmp.eq.s32.totalorder %s23, 0
      %p44 = por %p42, %p43
      %p45 = scmp.ne.s32.totalorder %s31, %s32
      %p46 = scmp.eq.s32.totalorder %s24, 1
      %p47 = por %p45, %p46
      %p49 = scmp.ne.s32.totalorder %s32, %s48
      %p50 = scmp.eq.s32.totalorder %s24, 0
      %p51 = por %p49, %p50
      %s53 = sadd.s32 %s52, 1
      %p56 = scmp.eq.s32.totalorder %s18, 1
      %p57 = scmp.ne.s32.totalorder %s52, %s54
      %p58 = scmp.eq.s32.totalorder %s18, 0
      %p59 = por %p57, %p58
      %p60 = scmp.ne.s32.totalorder %s52, %s54
      %p61 = scmp.eq.s32.totalorder %s23, 1
      %p62 = por %p60, %p61
      %p63 = scmp.ne.s32.totalorder %s54, %s55
      %p64 = scmp.eq.s32.totalorder %s23, 0
      %p65 = por %p63, %p64
      %p66 = scmp.ne.s32.totalorder %s54, %s55
      %p67 = scmp.eq.s32.totalorder %s24, 1
      %p68 = por %p66, %p67
      %p70 = scmp.ne.s32.totalorder %s55, %s69
      %p71 = scmp.eq.s32.totalorder %s24, 0
      %p72 = por %p70, %p71
      %s74 = sadd.s32 %s73, 1
      %p77 = scmp.eq.s32.totalorder %s18, 1
      %p78 = scmp.ne.s32.totalorder %s73, %s75
      %p79 = scmp.eq.s32.totalorder %s18, 0
      %p80 = por %p78, %p79
      %p81 = scmp.ne.s32.totalorder %s73, %s75
      %p82 = scmp.eq.s32.totalorder %s23, 1
      %p83 = por %p81, %p82
      %p84 = scmp.ne.s32.totalorder %s75, %s76
      %p85 = scmp.eq.s32.totalorder %s23, 0
      %p86 = por %p84, %p85
      %p87 = scmp.ne.s32.totalorder %s75, %s76
      %p88 = scmp.eq.s32.totalorder %s24, 1
      %p89 = por %p87, %p88
      %p91 = scmp.ne.s32.totalorder %s76, %s90
      %p92 = scmp.eq.s32.totalorder %s24, 0
      %p93 = por %p91, %p92
      %s95 = sadd.s32 %s94, 1
      %p98 = scmp.eq.s32.totalorder %s18, 1
      %p99 = scmp.ne.s32.totalorder %s94, %s96
      %p100 = scmp.eq.s32.totalorder %s18, 0
      %p101 = por %p99, %p100
      %p102 = scmp.ne.s32.totalorder %s94, %s96
      %p103 = scmp.eq.s32.totalorder %s23, 1
      %p104 = por %p102, %p103
      %p105 = scmp.ne.s32.totalorder %s96, %s97
      %p106 = scmp.eq.s32.totalorder %s23, 0
      %p107 = por %p105, %p106
      %p108 = scmp.ne.s32.totalorder %s96, %s97
      %p109 = scmp.eq.s32.totalorder %s24, 1
      %p110 = por %p108, %p109
      %p112 = scmp.ne.s32.totalorder %s97, %s111
      %p113 = scmp.eq.s32.totalorder %s24, 0
      %p114 = por %p112, %p113
      %s116 = sadd.s32 %s115, 1
      %p119 = scmp.eq.s32.totalorder %s18, 1
      %p120 = scmp.ne.s32.totalorder %s115, %s117
      %p121 = scmp.eq.s32.totalorder %s18, 0
      %p122 = por %p120, %p121
      %p123 = scmp.ne.s32.totalorder %s115, %s117
      %p124 = scmp.eq.s32.totalorder %s23, 1
      %p125 = por %p123, %p124
      %p126 = scmp.ne.s32.totalorder %s117, %s118
      %p127 = scmp.eq.s32.totalorder %s23, 0
      %p128 = por %p126, %p127
      %p129 = scmp.ne.s32.totalorder %s117, %s118
      %p130 = scmp.eq.s32.totalorder %s24, 1
      %p131 = por %p129, %p130
      %p133 = scmp.ne.s32.totalorder %s118, %s132
      %p134 = scmp.eq.s32.totalorder %s24, 0
      %p135 = por %p133, %p134
      %s136 = ssub.s32 %s18, %s25
      %p137 = scmp.eq.s32.totalorder %s136, 0
      %s139 = sadd.s32 %s138, 1
      %s140 = scalar_select %p137, %s138, %s139
      %p143 = pneg %p137
      %p144 = scmp.eq.s32.totalorder %s18, 1
      %p145 = por %p143, %p144
      %p146 = scmp.ne.s32.totalorder %s138, %s141
      %p147 = scmp.eq.s32.totalorder %s18, 0
      %p148 = por %p146, %p147
      %p149 = scmp.ne.s32.totalorder %s138, %s141
      %p150 = scmp.eq.s32.totalorder %s23, 1
      %p151 = por %p149, %p150
      %p152 = scmp.ne.s32.totalorder %s141, %s142
      %p153 = scmp.eq.s32.totalorder %s23, 0
      %p154 = por %p152, %p153
      %p155 = scmp.ne.s32.totalorder %s141, %s142
      %p156 = scmp.eq.s32.totalorder %s24, 1
      %p157 = por %p155, %p156
      %p159 = scmp.ne.s32.totalorder %s142, %s158
      %p160 = scmp.eq.s32.totalorder %s24, 0
      %p161 = por %p159, %p160
      %p162 = scmp.le.s32.totalorder 1, %s18
      %p163 = scmp.lt.s32.totalorder %s18, 3
      %p164 = pnand %p162, %p163
      %p165 = pneg %p164
      // Predicated region
      $region9: #{tpu_custom_call.1} parent=5 // pred_check
        _
      $region10: #{tpu_custom_call.1} parent=5 // pred_check_branch
        %167 = sbr.rel (%p164) target = $region12
      $region11: #{tpu_custom_call.1} parent=5 // pred_region
        %s168 = ssub.s32 %s18, 1
        // Predicated region
        $region13: #{tpu_custom_call.1} parent=11 // pred_check
          %p169 = pneg %p65
        $region14: #{tpu_custom_call.1} parent=11 // pred_check_branch
          %171 = sbr.rel (%p169) target = $region16
        $region15: #{tpu_custom_call.1} parent=11 // pred_region
          %s173 = ssub.s32 512, 512
          %174 = vsyncadd [#allocation6], %s173
          %s175 = sshll.u32 [#allocation5], 4
          %s176 = int_to_ptr.vmem [resolvable:$true] %s175
          %181 = dma.hbm_to_vmem [thread:$0]  %s1, 512, %s176, [#allocation6], 128, 128, 8
        $region16: #{tpu_custom_call.1} parent=11 // pred_fallthru
          _
        // Predicated region
        $region17: #{tpu_custom_call.1} parent=11 // pred_check
          %p182 = pneg %p86
        $region18: #{tpu_custom_call.1} parent=11 // pred_check_branch
          %184 = sbr.rel (%p182) target = $region20
        $region19: #{tpu_custom_call.1} parent=11 // pred_region
          %s186 = ssub.s32 512, 512
          %187 = vsyncadd [#allocation6], %s186
          %s188 = sshll.u32 [#allocation7], 4
          %s189 = int_to_ptr.vmem [resolvable:$true] %s188
          %194 = dma.hbm_to_vmem [thread:$0]  %s2, 512, %s189, [#allocation6], 128, 128, 8
        $region20: #{tpu_custom_call.1} parent=11 // pred_fallthru
          _
        // Predicated region
        $region21: #{tpu_custom_call.1} parent=11 // pred_check
          %p195 = pneg %p107
        $region22: #{tpu_custom_call.1} parent=11 // pred_check_branch
          %197 = sbr.rel (%p195) target = $region24
        $region23: #{tpu_custom_call.1} parent=11 // pred_region
          _
        $region24: #{tpu_custom_call.1} parent=11 // pred_fallthru
          _
        // Predicated region
        $region25: #{tpu_custom_call.1} parent=11 // pred_check
          %p198 = pneg %p128
        $region26: #{tpu_custom_call.1} parent=11 // pred_check_branch
          %200 = sbr.rel (%p198) target = $region28
        $region27: #{tpu_custom_call.1} parent=11 // pred_region
          _
        $region28: #{tpu_custom_call.1} parent=11 // pred_fallthru
          _
      $region12: #{tpu_custom_call.1} parent=5 // pred_fallthru
        _
      %p201 = scmp.lt.s32.totalorder %s18, 2
      // Predicated region
      $region29: #{tpu_custom_call.1} parent=5 // pred_check
        %p202 = pneg %p201
      $region30: #{tpu_custom_call.1} parent=5 // pred_check_branch
        %204 = sbr.rel (%p202) target = $region32
      $region31: #{tpu_custom_call.1} parent=5 // pred_region
        // Predicated region
        $region33: #{tpu_custom_call.1} parent=31 // pred_check
          %p205 = pneg %p38
        $region34: #{tpu_custom_call.1} parent=31 // pred_check_branch
          %207 = sbr.rel (%p205) target = $region36
        $region35: #{tpu_custom_call.1} parent=31 // pred_region
          %s208 = sand.u32 %s28, 1
          %s209 = scalar_lea.sflag [#allocation3], %s208
          %s210 = sand.u32 %s28, 1
          %s211 = smul.addr %s210, 8
          %s212 = scalar_lea.vmem [#allocation2], %s211
          %s214 = ssub.s32 128, 128
          %215 = vsyncadd %s209, %s214
          %s216 = smul.addr %s18, 128
          %s217 = scalar_lea.hbm %s0, %s216
          %s219 = sshll.u32 %s212, 4
          %s220 = int_to_ptr.vmem [resolvable:$true] %s219
          %222 = dma.hbm_to_vmem [thread:$0]  %s217, 128, %s220, %s209
        $region36: #{tpu_custom_call.1} parent=31 // pred_fallthru
          _
      $region32: #{tpu_custom_call.1} parent=5 // pred_fallthru
        _
      %p223 = scmp.le.s32.totalorder 1, %s18
      %p224 = scmp.lt.s32.totalorder %s18, 3
      %p225 = pnand %p223, %p224
      %p226 = pneg %p225
      // Predicated region
      $region37: #{tpu_custom_call.1} parent=5 // pred_check
        _
      $region38: #{tpu_custom_call.1} parent=5 // pred_check_branch
        %228 = sbr.rel (%p225) target = $region40
      $region39: #{tpu_custom_call.1} parent=5 // pred_region
        %s229 = ssub.s32 %s18, 1
        %s230 = sand.u32 %s31, 1
        %s231 = scalar_lea.sflag [#allocation3], %s230
        %s232 = sand.u32 %s31, 1
        %s233 = smul.addr %s232, 8
        %s234 = scalar_lea.vmem [#allocation2], %s233
        // Predicated region
        $region41: #{tpu_custom_call.1} parent=39 // pred_check
          %p235 = pneg %p44
        $region42: #{tpu_custom_call.1} parent=39 // pred_check_branch
          %237 = sbr.rel (%p235) target = $region44
        $region43: #{tpu_custom_call.1} parent=39 // pred_region
          %238 = dma.done %s231, 128
        $region44: #{tpu_custom_call.1} parent=39 // pred_fallthru
          _
        // Predicated region
        $region45: #{tpu_custom_call.1} parent=39 // pred_check
          %p239 = pneg %p65
        $region46: #{tpu_custom_call.1} parent=39 // pred_check_branch
          %241 = sbr.rel (%p239) target = $region48
        $region47: #{tpu_custom_call.1} parent=39 // pred_region
          %242 = dma.done [#allocation6], 512
        $region48: #{tpu_custom_call.1} parent=39 // pred_fallthru
          _
        // Predicated region
        $region49: #{tpu_custom_call.1} parent=39 // pred_check
          %p243 = pneg %p86
        $region50: #{tpu_custom_call.1} parent=39 // pred_check_branch
          %245 = sbr.rel (%p243) target = $region52
        $region51: #{tpu_custom_call.1} parent=39 // pred_region
          %246 = dma.done [#allocation6], 512
        $region52: #{tpu_custom_call.1} parent=39 // pred_fallthru
          _
        %s247 = sand.u32 %s31, 1
        %s248 = scalar_lea.sflag [#allocation3], %s247
        %s249 = sand.u32 %s31, 1
        %s250 = smul.addr %s249, 8
        %s251 = scalar_lea.vmem [#allocation2], %s250
        %p252 = pneg %p44
        %p253 = pneg %p41
        %p254 = pneg %p65
        %p255 = pneg %p62
        %p256 = pneg %p86
        %p257 = pneg %p83
        %p258 = pneg %p107
        %p259 = pneg %p104
        %p260 = pneg %p128
        %p261 = pneg %p125
        %p262 = pneg %p154
        %p263 = pneg %p151
        %s264 = sand.u32 %s141, 1
        %s265 = scalar_lea.sflag [#allocation4], %s264
        %s266 = sand.u32 %s141, 1
        %s267 = scalar_lea.vmem [#allocation8], %s266
        %v268 = vld [vmem:[%s234] sm:$0xff]
        %vm269 = vcmask 64512
        %v271 = vsel %vm269, 1.0, 0
        %273 = vmatprep.subr.mxu0 0.0
        %274 = vmatpush1.msra.mxu0 0.0
        %275 = vmatprep.subr.mxu0 0.0
        %276 = vmatpush1.msra.mxu0 0.0
        %277 = vmatprep.subr.mxu0 0.0
        %278 = vmatpush1.msra.mxu0 0.0
        %279 = vmatprep.subr.mxu0 0.0
        %280 = vmatpush1.msra.mxu0 0.0
        %281 = vmatprep.subr.mxu0 0.0
        %282 = vmatpush1.msra.mxu0 0.0
        %283 = vmatprep.subr.mxu0 0.0
        %284 = vmatpush1.msra.mxu0 0.0
        %285 = vmatprep.subr.mxu0 0.0
        %286 = vmatpush1.msra.mxu0 0.0
        %287 = vmatprep.subr.mxu0 0.0
        %288 = vmatpush1.msra.mxu0 0.0
        %289 = vmatprep.subr.mxu0 0.0
        %290 = vmatpush1.msra.mxu0 0.0
        %291 = vmatprep.subr.mxu0 0.0
        %292 = vmatpush1.msra.mxu0 0.0
        %293 = vmatprep.subr.mxu0 0.0
        %294 = vmatpush1.msra.mxu0 0.0
        %295 = vmatprep.subr.mxu0 0.0
        %296 = vmatpush1.msra.mxu0 0.0
        %297 = vmatprep.subr.mxu0 0.0
        %298 = vmatpush1.msra.mxu0 0.0
        %299 = vmatprep.subr.mxu0 0.0
        %300 = vmatpush1.msra.mxu0 0.0
        %301 = vmatprep.subr.mxu0 0.0
        %302 = vmatpush1.msra.mxu0 0.0
        %303 = vmatprep.subr.mxu0 0.0
        %304 = vmatpush1.msra.mxu0 %v268
        %305 = vmatprep.subr.mxu0 0.0
        %306 = vmatpush2.msra.mxu0 0.0
        %307 = vmatprep.subr.mxu0 0.0
        %308 = vmatpush2.msra.mxu0 0.0
        %309 = vmatprep.subr.mxu0 0.0
        %310 = vmatpush2.msra.mxu0 0.0
        %311 = vmatprep.subr.mxu0 0.0
        %312 = vmatpush2.msra.mxu0 0.0
        %313 = vmatprep.subr.mxu0 0.0
        %314 = vmatpush2.msra.mxu0 0.0
        %315 = vmatprep.subr.mxu0 0.0
        %316 = vmatpush2.msra.mxu0 0.0
        %317 = vmatprep.subr.mxu0 0.0
        %318 = vmatpush2.msra.mxu0 0.0
        %319 = vmatprep.subr.mxu0 0.0
        %320 = vmatpush2.msra.mxu0 0.0
        %321 = vmatprep.subr.mxu0 0.0
        %322 = vmatpush2.msra.mxu0 0.0
        %323 = vmatprep.subr.mxu0 0.0
        %324 = vmatpush2.msra.mxu0 0.0
        %325 = vmatprep.subr.mxu0 0.0
        %326 = vmatpush2.msra.mxu0 0.0
        %327 = vmatprep.subr.mxu0 0.0
        %328 = vmatpush2.msra.mxu0 0.0
        %329 = vmatprep.subr.mxu0 0.0
        %330 = vmatpush2.msra.mxu0 0.0
        %331 = vmatprep.subr.mxu0 0.0
        %332 = vmatpush2.msra.mxu0 0.0
        %333 = vmatprep.subr.mxu0 0.0
        %334 = vmatpush2.msra.mxu0 0.0
        %335 = vmatprep.subr.mxu0 0.0
        %336 = vmatpush2.msra.mxu0 0.0
        %337 = vmatprep.mubr.f32.mxu0 0.0
        %338 = vmatmul.mubr.f32.gmra.mxu0 %v271
        %v339 = vpop.f32.mrf.mxu0
        %v340 = vadd.f32 0.0, %v339
        %v341 = vpop.f32.mrf.mxu0
        %342 = vdwg.mxu0
        %v343 = vld [vmem:[#allocation7] sm:$0xff]
        %v344 = vld [vmem:[#allocation7 + $0x8] sm:$0xff]
        %v345 = vld [vmem:[#allocation7 + $0x10] sm:$0xff]
        %v346 = vld [vmem:[#allocation7 + $0x18] sm:$0xff]
        %v347 = vld [vmem:[%s4] sm:$0x1]
        %v348 = vmul.f32 %v347, 8.0
        %vm349 = vcmask 261120
        %v351 = vsel %vm349, %v340, 0
        %353 = vmatprep.subr.mxu0 0.0
        %354 = vmatpush1.msra.mxu0 0.0
        %355 = vmatprep.subr.mxu0 0.0
        %356 = vmatpush1.msra.mxu0 0.0
        %357 = vmatprep.subr.mxu0 0.0
        %358 = vmatpush1.msra.mxu0 0.0
        %359 = vmatprep.subr.mxu0 0.0
        %360 = vmatpush1.msra.mxu0 0.0
        %361 = vmatprep.subr.mxu0 0.0
        %362 = vmatpush1.msra.mxu0 0.0
        %363 = vmatprep.subr.mxu0 0.0
        %364 = vmatpush1.msra.mxu0 0.0
        %365 = vmatprep.subr.mxu0 0.0
        %366 = vmatpush1.msra.mxu0 0.0
        %367 = vmatprep.subr.mxu0 0.0
        %368 = vmatpush1.msra.mxu0 0.0
        %369 = vmatprep.subr.mxu0 0.0
        %370 = vmatpush1.msra.mxu0 0.0
        %371 = vmatprep.subr.mxu0 0.0
        %372 = vmatpush1.msra.mxu0 0.0
        %373 = vmatprep.subr.mxu0 0.0
        %374 = vmatpush1.msra.mxu0 0.0
        %375 = vmatprep.subr.mxu0 0.0
        %376 = vmatpush1.msra.mxu0 0.0
        %377 = vmatprep.subr.mxu0 0.0
        %378 = vmatpush1.msra.mxu0 %v346
        %379 = vmatprep.subr.mxu0 0.0
        %380 = vmatpush1.msra.mxu0 %v345
        %381 = vmatprep.subr.mxu0 0.0
        %382 = vmatpush1.msra.mxu0 %v344
        %383 = vmatprep.subr.mxu0 0.0
        %384 = vmatpush1.msra.mxu0 %v343
        %385 = vmatprep.subr.mxu0 0.0
        %386 = vmatpush2.msra.mxu0 0.0
        %387 = vmatprep.subr.mxu0 0.0
        %388 = vmatpush2.msra.mxu0 0.0
        %389 = vmatprep.subr.mxu0 0.0
        %390 = vmatpush2.msra.mxu0 0.0
        %391 = vmatprep.subr.mxu0 0.0
        %392 = vmatpush2.msra.mxu0 0.0
        %393 = vmatprep.subr.mxu0 0.0
        %394 = vmatpush2.msra.mxu0 0.0
        %395 = vmatprep.subr.mxu0 0.0
        %396 = vmatpush2.msra.mxu0 0.0
        %397 = vmatprep.subr.mxu0 0.0
        %398 = vmatpush2.msra.mxu0 0.0
        %399 = vmatprep.subr.mxu0 0.0
        %400 = vmatpush2.msra.mxu0 0.0
        %401 = vmatprep.subr.mxu0 0.0
        %402 = vmatpush2.msra.mxu0 0.0
        %403 = vmatprep.subr.mxu0 0.0
        %404 = vmatpush2.msra.mxu0 0.0
        %405 = vmatprep.subr.mxu0 0.0
        %406 = vmatpush2.msra.mxu0 0.0
        %407 = vmatprep.subr.mxu0 0.0
        %408 = vmatpush2.msra.mxu0 0.0
        %409 = vmatprep.subr.mxu0 0.0
        %410 = vmatpush2.msra.mxu0 0.0
        %411 = vmatprep.subr.mxu0 0.0
        %412 = vmatpush2.msra.mxu0 0.0
        %413 = vmatprep.subr.mxu0 0.0
        %414 = vmatpush2.msra.mxu0 0.0
        %415 = vmatprep.subr.mxu0 0.0
        %416 = vmatpush2.msra.mxu0 0.0
        %417 = vmatprep.mubr.f32.mxu0 0.0
        %418 = vmatmul.mubr.f32.gmra.mxu0 %v351
        %v419 = vpop.f32.mrf.mxu0
        %v420 = vadd.f32 %v348, %v419
        %v421 = vpop.f32.mrf.mxu0
        %422 = vdwg.mxu0
        %v423 = vmul.f32 %v420, 0.17677669
        %v424 = vld [vmem:[#allocation5] sm:$0xff]
        %v425 = vld [vmem:[#allocation5 + $0x8] sm:$0xff]
        %v426 = vld [vmem:[#allocation5 + $0x10] sm:$0xff]
        %v427 = vld [vmem:[#allocation5 + $0x18] sm:$0xff]
        %v429 = vsel %vm349, %v423, 0
        %v432 = vsel %vm349, %v424, 0
        %v435 = vsel %vm349, %v425, 0
        %v438 = vsel %vm349, %v426, 0
        %v441 = vsel %vm349, %v427, 0
        %443 = vmatprep.subr.mxu0 0.0
        %444 = vmatpush1.xpose.msra.mxu0 0.0
        %445 = vmatprep.subr.mxu0 0.0
        %446 = vmatpush1.xpose.msra.mxu0 0.0
        %447 = vmatprep.subr.mxu0 0.0
        %448 = vmatpush1.xpose.msra.mxu0 0.0
        %449 = vmatprep.subr.mxu0 0.0
        %450 = vmatpush1.xpose.msra.mxu0 0.0
        %451 = vmatprep.subr.mxu0 0.0
        %452 = vmatpush1.xpose.msra.mxu0 0.0
        %453 = vmatprep.subr.mxu0 0.0
        %454 = vmatpush1.xpose.msra.mxu0 0.0
        %455 = vmatprep.subr.mxu0 0.0
        %456 = vmatpush1.xpose.msra.mxu0 0.0
        %457 = vmatprep.subr.mxu0 0.0
        %458 = vmatpush1.xpose.msra.mxu0 0.0
        %459 = vmatprep.subr.mxu0 0.0
        %460 = vmatpush1.xpose.msra.mxu0 0.0
        %461 = vmatprep.subr.mxu0 0.0
        %462 = vmatpush1.xpose.msra.mxu0 0.0
        %463 = vmatprep.subr.mxu0 0.0
        %464 = vmatpush1.xpose.msra.mxu0 0.0
        %465 = vmatprep.subr.mxu0 0.0
        %466 = vmatpush1.xpose.msra.mxu0 0.0
        %467 = vmatprep.subr.mxu0 0.0
        %468 = vmatpush1.xpose.msra.mxu0 %v441
        %469 = vmatprep.subr.mxu0 0.0
        %470 = vmatpush1.xpose.msra.mxu0 %v438
        %471 = vmatprep.subr.mxu0 0.0
        %472 = vmatpush1.xpose.msra.mxu0 %v435
        %473 = vmatprep.subr.mxu0 0.0
        %474 = vmatpush1.xpose.msra.mxu0 %v432
        %475 = vmatprep.subr.mxu0 0.0
        %476 = vmatpush2.xpose.msra.mxu0 0.0
        %477 = vmatprep.subr.mxu0 0.0
        %478 = vmatpush2.xpose.msra.mxu0 0.0
        %479 = vmatprep.subr.mxu0 0.0
        %480 = vmatpush2.xpose.msra.mxu0 0.0
        %481 = vmatprep.subr.mxu0 0.0
        %482 = vmatpush2.xpose.msra.mxu0 0.0
        %483 = vmatprep.subr.mxu0 0.0
        %484 = vmatpush2.xpose.msra.mxu0 0.0
        %485 = vmatprep.subr.mxu0 0.0
        %486 = vmatpush2.xpose.msra.mxu0 0.0
        %487 = vmatprep.subr.mxu0 0.0
        %488 = vmatpush2.xpose.msra.mxu0 0.0
        %489 = vmatprep.subr.mxu0 0.0
        %490 = vmatpush2.xpose.msra.mxu0 0.0
        %491 = vmatprep.subr.mxu0 0.0
        %492 = vmatpush2.xpose.msra.mxu0 0.0
        %493 = vmatprep.subr.mxu0 0.0
        %494 = vmatpush2.xpose.msra.mxu0 0.0
        %495 = vmatprep.subr.mxu0 0.0
        %496 = vmatpush2.xpose.msra.mxu0 0.0
        %497 = vmatprep.subr.mxu0 0.0
        %498 = vmatpush2.xpose.msra.mxu0 0.0
        %499 = vmatprep.subr.mxu0 0.0
        %500 = vmatpush2.xpose.msra.mxu0 0.0
        %501 = vmatprep.subr.mxu0 0.0
        %502 = vmatpush2.xpose.msra.mxu0 0.0
        %503 = vmatprep.subr.mxu0 0.0
        %504 = vmatpush2.xpose.msra.mxu0 0.0
        %505 = vmatprep.subr.mxu0 0.0
        %506 = vmatpush2.xpose.msra.mxu0 0.0
        %507 = vmatprep.mubr.f32.mxu0 0.0
        %508 = vmatmul.mubr.f32.gmra.mxu0 %v429
        %v509 = vpop.f32.mrf.mxu0
        %v510 = vadd.f32 0.0, %v509
        %v511 = vpop.f32.mrf.mxu0
        %512 = vdwg.mxu0
        %v513 = vld [vmem:[%s3] sm:$0x1]
        %v514 = vmul.f32 %v513, %v423
        %vm515 = vcmask 253952
        %v516 = vsel %vm515, %v514, 0.0
        %517 = vadd.xlane.f32.xlu0 %v516
        %v518 = vpop.xlane.xlu0 %517
        %v520 = vsel %vm349, %v510, 0
        %v523 = vsel %vm349, %v268, 0
        %525 = vmatprep.subr.mxu0 0.0
        %526 = vmatpush1.xpose.msra.mxu0 0.0
        %527 = vmatprep.subr.mxu0 0.0
        %528 = vmatpush1.xpose.msra.mxu0 0.0
        %529 = vmatprep.subr.mxu0 0.0
        %530 = vmatpush1.xpose.msra.mxu0 0.0
        %531 = vmatprep.subr.mxu0 0.0
        %532 = vmatpush1.xpose.msra.mxu0 0.0
        %533 = vmatprep.subr.mxu0 0.0
        %534 = vmatpush1.xpose.msra.mxu0 0.0
        %535 = vmatprep.subr.mxu0 0.0
        %536 = vmatpush1.xpose.msra.mxu0 0.0
        %537 = vmatprep.subr.mxu0 0.0
        %538 = vmatpush1.xpose.msra.mxu0 0.0
        %539 = vmatprep.subr.mxu0 0.0
        %540 = vmatpush1.xpose.msra.mxu0 0.0
        %541 = vmatprep.subr.mxu0 0.0
        %542 = vmatpush1.xpose.msra.mxu0 0.0
        %543 = vmatprep.subr.mxu0 0.0
        %544 = vmatpush1.xpose.msra.mxu0 0.0
        %545 = vmatprep.subr.mxu0 0.0
        %546 = vmatpush1.xpose.msra.mxu0 0.0
        %547 = vmatprep.subr.mxu0 0.0
        %548 = vmatpush1.xpose.msra.mxu0 0.0
        %549 = vmatprep.subr.mxu0 0.0
        %550 = vmatpush1.xpose.msra.mxu0 0.0
        %551 = vmatprep.subr.mxu0 0.0
        %552 = vmatpush1.xpose.msra.mxu0 0.0
        %553 = vmatprep.subr.mxu0 0.0
        %554 = vmatpush1.xpose.msra.mxu0 0.0
        %555 = vmatprep.subr.mxu0 0.0
        %556 = vmatpush1.xpose.msra.mxu0 %v523
        %557 = vmatprep.subr.mxu0 0.0
        %558 = vmatpush2.xpose.msra.mxu0 0.0
        %559 = vmatprep.subr.mxu0 0.0
        %560 = vmatpush2.xpose.msra.mxu0 0.0
        %561 = vmatprep.subr.mxu0 0.0
        %562 = vmatpush2.xpose.msra.mxu0 0.0
        %563 = vmatprep.subr.mxu0 0.0
        %564 = vmatpush2.xpose.msra.mxu0 0.0
        %565 = vmatprep.subr.mxu0 0.0
        %566 = vmatpush2.xpose.msra.mxu0 0.0
        %567 = vmatprep.subr.mxu0 0.0
        %568 = vmatpush2.xpose.msra.mxu0 0.0
        %569 = vmatprep.subr.mxu0 0.0
        %570 = vmatpush2.xpose.msra.mxu0 0.0
        %571 = vmatprep.subr.mxu0 0.0
        %572 = vmatpush2.xpose.msra.mxu0 0.0
        %573 = vmatprep.subr.mxu0 0.0
        %574 = vmatpush2.xpose.msra.mxu0 0.0
        %575 = vmatprep.subr.mxu0 0.0
        %576 = vmatpush2.xpose.msra.mxu0 0.0
        %577 = vmatprep.subr.mxu0 0.0
        %578 = vmatpush2.xpose.msra.mxu0 0.0
        %579 = vmatprep.subr.mxu0 0.0
        %580 = vmatpush2.xpose.msra.mxu0 0.0
        %581 = vmatprep.subr.mxu0 0.0
        %582 = vmatpush2.xpose.msra.mxu0 0.0
        %583 = vmatprep.subr.mxu0 0.0
        %584 = vmatpush2.xpose.msra.mxu0 0.0
        %585 = vmatprep.subr.mxu0 0.0
        %586 = vmatpush2.xpose.msra.mxu0 0.0
        %587 = vmatprep.subr.mxu0 0.0
        %588 = vmatpush2.xpose.msra.mxu0 0.0
        %589 = vmatprep.mubr.f32.mxu0 0.0
        %590 = vmatmul.mubr.f32.gmra.mxu0 %v520
        %v591 = vpop.f32.mrf.mxu0
        %v592 = vadd.f32 %v518, %v591
        %v593 = vpop.f32.mrf.mxu0
        %594 = vdwg.mxu0
        %vm595 = vcmask 57344
        %v596 = vsel %vm595, %v592, -inf
        %597 = vmax.xlane.f32.xlu0 %v596
        %v598 = vpop.xlane.xlu0 %597
        %v599 = vsub.f32 %v592, %v598
        %v600 = vmul.f32 %v599, 1.442695
        %v601 = vpow.pop %v600
        %v602 = vsel %vm595, %v601, 0.0
        %603 = vadd.xlane.f32.xlu0 %v602
        %v604 = vpop.xlane.xlu0 %603
        %v605 = vrcp.pop %v604
        %v606 = vmul.f32 %v601, %v605
        %v608 = vsel %vm269, %v606, 0
        %610 = vmatprep.subr.mxu0 0.0
        %611 = vmatpush1.msra.mxu0 0.0
        %612 = vmatprep.subr.mxu0 0.0
        %613 = vmatpush1.msra.mxu0 0.0
        %614 = vmatprep.subr.mxu0 0.0
        %615 = vmatpush1.msra.mxu0 0.0
        %616 = vmatprep.subr.mxu0 0.0
        %617 = vmatpush1.msra.mxu0 0.0
        %618 = vmatprep.subr.mxu0 0.0
        %619 = vmatpush1.msra.mxu0 0.0
        %620 = vmatprep.subr.mxu0 0.0
        %621 = vmatpush1.msra.mxu0 0.0
        %622 = vmatprep.subr.mxu0 0.0
        %623 = vmatpush1.msra.mxu0 0.0
        %624 = vmatprep.subr.mxu0 0.0
        %625 = vmatpush1.msra.mxu0 0.0
        %626 = vmatprep.subr.mxu0 0.0
        %627 = vmatpush1.msra.mxu0 0.0
        %628 = vmatprep.subr.mxu0 0.0
        %629 = vmatpush1.msra.mxu0 0.0
        %630 = vmatprep.subr.mxu0 0.0
        %631 = vmatpush1.msra.mxu0 0.0
        %632 = vmatprep.subr.mxu0 0.0
        %633 = vmatpush1.msra.mxu0 0.0
        %634 = vmatprep.subr.mxu0 0.0
        %635 = vmatpush1.msra.mxu0 0.0
        %636 = vmatprep.subr.mxu0 0.0
        %637 = vmatpush1.msra.mxu0 0.0
        %638 = vmatprep.subr.mxu0 0.0
        %639 = vmatpush1.msra.mxu0 0.0
        %640 = vmatprep.subr.mxu0 0.0
        %641 = vmatpush1.msra.mxu0 %v268
        %642 = vmatprep.subr.mxu0 0.0
        %643 = vmatpush2.msra.mxu0 0.0
        %644 = vmatprep.subr.mxu0 0.0
        %645 = vmatpush2.msra.mxu0 0.0
        %646 = vmatprep.subr.mxu0 0.0
        %647 = vmatpush2.msra.mxu0 0.0
        %648 = vmatprep.subr.mxu0 0.0
        %649 = vmatpush2.msra.mxu0 0.0
        %650 = vmatprep.subr.mxu0 0.0
        %651 = vmatpush2.msra.mxu0 0.0
        %652 = vmatprep.subr.mxu0 0.0
        %653 = vmatpush2.msra.mxu0 0.0
        %654 = vmatprep.subr.mxu0 0.0
        %655 = vmatpush2.msra.mxu0 0.0
        %656 = vmatprep.subr.mxu0 0.0
        %657 = vmatpush2.msra.mxu0 0.0
        %658 = vmatprep.subr.mxu0 0.0
        %659 = vmatpush2.msra.mxu0 0.0
        %660 = vmatprep.subr.mxu0 0.0
        %661 = vmatpush2.msra.mxu0 0.0
        %662 = vmatprep.subr.mxu0 0.0
        %663 = vmatpush2.msra.mxu0 0.0
        %664 = vmatprep.subr.mxu0 0.0
        %665 = vmatpush2.msra.mxu0 0.0
        %666 = vmatprep.subr.mxu0 0.0
        %667 = vmatpush2.msra.mxu0 0.0
        %668 = vmatprep.subr.mxu0 0.0
        %669 = vmatpush2.msra.mxu0 0.0
        %670 = vmatprep.subr.mxu0 0.0
        %671 = vmatpush2.msra.mxu0 0.0
        %672 = vmatprep.subr.mxu0 0.0
        %673 = vmatpush2.msra.mxu0 0.0
        %674 = vmatprep.mubr.f32.mxu0 0.0
        %675 = vmatmul.mubr.f32.gmra.mxu0 %v608
        %v676 = vpop.f32.mrf.mxu0
        %v677 = vadd.f32 0.0, %v676
        %v678 = vpop.f32.mrf.mxu0
        %679 = vdwg.mxu0
        %680 = vst.msk [vmem:[%s267] sm:$0x1] %vm515, %v677
        %s681 = sand.u32 %s141, 1
        %s682 = scalar_lea.sflag [#allocation4], %s681
        %s683 = sand.u32 %s141, 1
        %s684 = scalar_lea.vmem [#allocation8], %s683
        // Predicated region
        $region53: #{tpu_custom_call.1} parent=39 // pred_check
          %p685 = pneg %p151
        $region54: #{tpu_custom_call.1} parent=39 // pred_check_branch
          %687 = sbr.rel (%p685) target = $region56
        $region55: #{tpu_custom_call.1} parent=39 // pred_region
          %s689 = ssub.s32 16, 16
          %690 = vsyncadd %s682, %s689
          %s691 = smul.addr %s23, 16
          %s692 = scalar_lea.hbm %s5, %s691
          %s694 = sshll.u32 %s684, 4
          %s695 = int_to_ptr.vmem [resolvable:$true] %s694
          %697 = dma.vmem_to_hbm [thread:$0]  %s695, 16, %s692, %s682
        $region56: #{tpu_custom_call.1} parent=39 // pred_fallthru
          _
      $region40: #{tpu_custom_call.1} parent=5 // pred_fallthru
        _
      %p698 = scmp.le.s32.totalorder 2, %s18
      // Predicated region
      $region57: #{tpu_custom_call.1} parent=5 // pred_check
        %p699 = pneg %p698
      $region58: #{tpu_custom_call.1} parent=5 // pred_check_branch
        %701 = sbr.rel (%p699) target = $region60
      $region59: #{tpu_custom_call.1} parent=5 // pred_region
        %s702 = ssub.s32 %s18, 2
        // Predicated region
        $region61: #{tpu_custom_call.1} parent=59 // pred_check
          %p703 = pneg %p157
        $region62: #{tpu_custom_call.1} parent=59 // pred_check_branch
          %705 = sbr.rel (%p703) target = $region64
        $region63: #{tpu_custom_call.1} parent=59 // pred_region
          %s706 = sand.u32 %s142, 1
          %s707 = scalar_lea.sflag [#allocation4], %s706
          %s708 = sand.u32 %s142, 1
          %s709 = scalar_lea.vmem [#allocation8], %s708
          %710 = dma.done %s707, 16
        $region64: #{tpu_custom_call.1} parent=59 // pred_fallthru
          _
      $region60: #{tpu_custom_call.1} parent=5 // pred_fallthru
        _
    $region6: #{tpu_custom_call.1} parent=1 // loop_footer
      %s22 = sadd.s32 1, %s18
    $region7: #{tpu_custom_call.1} parent=1 // loop_footer_branch
      %17 = sbr.rel target = $region3
    $region8: #{tpu_custom_call.1} parent=1 // loop_exit
      _
    %711 = vsyncpa [#allocation3], 1
    %s712 = scalar_lea.sflag [#allocation3], 1
    %713 = vsyncpa %s712, 1
    %714 = vsyncpa [#allocation6], 1
    %715 = vsyncpa [#allocation4], 1
    %s716 = scalar_lea.sflag [#allocation4], 1
    %717 = vsyncpa %s716, 1

</llo_original>
